<compile_context>
chip_gen: v5e
topology: v5e:2x2
jax: 0.10.0
libtpu: 0.0.40
codegen_flags: <defaults>
</compile_context>

<pallas_src>
import functools

import jax
import jax.numpy as jnp
from jax.experimental import pallas as pl
from jax.experimental.pallas import tpu as pltpu

_MAX_TILE_M = 512                      # >= 512 rows per review (HBM-roofline sweet spot)
_VMEM_LIMIT_BYTES = 32 * 1024 * 1024   # safe on v5e/v6e (128 MiB) and v7x (64 MiB)


def _round_up(x, m):
    return ((x + m - 1) // m) * m


def _linear_kernel(x_ref, w_ref, b_ref, o_ref):
    # One MXU push per row-tile; f32 accumulation; bias broadcast over rows.
    o_ref[...] = (
        jnp.dot(x_ref[...], w_ref[...], preferred_element_type=jnp.float32)
        + b_ref[...]
    ).astype(o_ref.dtype)


def linear_pallas(x, w_t, b_row):
    """y = x @ w_t + b_row with an M-tiled grid and VMEM-resident weights.

    x:     [M, K]          (zero-padded here to K_pad if K % 8 != 0)
    w_t:   [K_pad, H]      (pre-transposed + K-padded in __init__)
    b_row: [1, H]
    """
    M, K = x.shape
    K_pad, H = w_t.shape
    if K != K_pad:
        # Pad contraction dim to a multiple of 8 sublanes (padded columns hit
        # zero weight rows, so the result is unchanged).
        x = jnp.pad(x, ((0, 0), (0, K_pad - K)))

    # Full-extent block when M is small (legal for any M); 512-row tiles when
    # streaming large M (second-to-last block dim stays a multiple of 8).
    tile_m = M if M <= _MAX_TILE_M else _MAX_TILE_M
    grid = (pl.cdiv(M, tile_m),)

    itemsize_in = x.dtype.itemsize
    itemsize_out = x.dtype.itemsize
    flops = 2 * M * K_pad * H
    bytes_accessed = (
        M * K_pad * itemsize_in
        + (K_pad * H + H) * w_t.dtype.itemsize
        + M * H * itemsize_out
    )

    return pl.pallas_call(
        _linear_kernel,
        out_shape=jax.ShapeDtypeStruct((M, H), x.dtype),
        grid=grid,
        in_specs=[
            # TODO(synk): if xprof shows exposed DMA on this thin-K stream at
            # scale, add pipeline_mode=pl.Buffered(3) here.
            pl.BlockSpec((tile_m, K_pad), lambda i: (i, 0)),
            pl.BlockSpec((K_pad, H), lambda i: (0, 0)),   # resident weight
            pl.BlockSpec((1, H), lambda i: (0, 0)),       # resident bias
        ],
        out_specs=pl.BlockSpec((tile_m, H), lambda i: (i, 0)),
        compiler_params=pltpu.CompilerParams(
            dimension_semantics=("parallel",),            # shards rows over v7x's 2 TCs
            vmem_limit_bytes=_VMEM_LIMIT_BYTES,
        ),
        cost_estimate=pl.CostEstimate(
            flops=int(flops),
            transcendentals=0,
            bytes_accessed=int(bytes_accessed),
        ),
    )(x, w_t, b_row)


def task_encoder_forward(node_x, edge_x, graph_x, params):
    """Three independent linears; one jitted dispatch, three tiled pallas_calls."""
    (wn, bn), (we, be), (wg, bg) = params
    return (
        linear_pallas(node_x, wn, bn),
        linear_pallas(edge_x, we, be),
        linear_pallas(graph_x, wg, bg),
    )


class TaskEncoderPallas:
    """JAX/Pallas equivalent of the PyTorch TaskEncoder module."""

    def __init__(self, input_feature_dims, hidden_dim, key):
        self.hidden_dim = hidden_dim
        params = []
        for dim in input_feature_dims:
            key, kw, kb = jax.random.split(key, 3)
            # PyTorch nn.Linear default init: U(-1/sqrt(in), 1/sqrt(in))
            bound = 1.0 / (dim ** 0.5)
            w = jax.random.uniform(kw, (hidden_dim, dim), jnp.float32, -bound, bound)
            b = jax.random.uniform(kb, (hidden_dim,), jnp.float32, -bound, bound)
            # Hoisted layout work: transposed weight [K_pad, H] with K padded to
            # a multiple of 8 sublanes (zero rows), bias as a [1, H] row.
            k_pad = _round_up(dim, 8)
            w_t = jnp.zeros((k_pad, hidden_dim), jnp.float32).at[:dim, :].set(w.T)
            b_row = b.reshape(1, hidden_dim)
            params.append((w_t, b_row))
        self.params = tuple(params)
        self._forward = jax.jit(task_encoder_forward)

    def __call__(self, node_inputs, edge_inputs, graph_inputs):
        return self._forward(node_inputs, edge_inputs, graph_inputs, self.params)


if __name__ == "__main__":
    key = jax.random.PRNGKey(0)
    k_params, k_node, k_edge, k_graph = jax.random.split(key, 4)

    # Small shapes consistent with the forward pass.
    input_feature_dims = [16, 8, 12]   # node / edge / graph feature dims
    hidden_dim = 32
    num_nodes, num_edges, num_graphs = 8, 16, 2

    enc = TaskEncoderPallas(input_feature_dims, hidden_dim, k_params)

    node_inputs = jax.random.normal(
        k_node, (num_nodes, input_feature_dims[0]), jnp.float32)
    edge_inputs = jax.random.normal(
        k_edge, (num_edges, input_feature_dims[1]), jnp.float32)
    graph_inputs = jax.random.normal(
        k_graph, (num_graphs, input_feature_dims[2]), jnp.float32)

    node_emb, edge_emb, graph_emb = enc(node_inputs, edge_inputs, graph_inputs)
    jax.block_until_ready((node_emb, edge_emb, graph_emb))

    # Reference check against plain JAX (use the un-padded slices of the params).
    refs = []
    for x, dim, (w_t, b_row) in zip(
        (node_inputs, edge_inputs, graph_inputs), input_feature_dims, enc.params
    ):
        refs.append(x @ w_t[:dim, :] + b_row[0])

    for out, ref in zip((node_emb, edge_emb, graph_emb), refs):
        assert out.shape == ref.shape
        assert jnp.allclose(out, ref, atol=1e-5, rtol=1e-5)

    print("KERNEL_OK")
</pallas_src>

<mosaic_0001>
module attributes {stable_mosaic.version = 11 : i64} {
  func.func @_linear_kernel(%arg0: i32, %arg1: memref<16x8xf32, #tpu.memory_space<vmem>>, %arg2: memref<8x32xf32, #tpu.memory_space<vmem>>, %arg3: memref<1x32xf32, #tpu.memory_space<vmem>>, %arg4: memref<16x32xf32, #tpu.memory_space<vmem>>) attributes {dimension_semantics = [#tpu.dimension_semantics<parallel>], iteration_bounds = array<i64: 1>, scalar_prefetch = 0 : i64, scratch_operands = 0 : i64, tpu.core_type = #tpu.core_type<tc>, window_params = [{transform_indices = @transform_0, window_bounds = array<i64: 16, 8>}, {pipeline_mode = #tpu.pipeline_mode<synchronous>, transform_indices = @transform_1, window_bounds = array<i64: 8, 32>}, {pipeline_mode = #tpu.pipeline_mode<synchronous>, transform_indices = @transform_2, window_bounds = array<i64: 1, 32>}, {transform_indices = @transform_3, window_bounds = array<i64: 16, 32>}]} {
    %c0 = arith.constant 0 : index
    %c0_0 = arith.constant 0 : index
    %0 = vector.load %arg1[%c0, %c0_0] : memref<16x8xf32, #tpu.memory_space<vmem>>, vector<16x8xf32>
    %c0_1 = arith.constant 0 : index
    %c0_2 = arith.constant 0 : index
    %1 = vector.load %arg2[%c0_1, %c0_2] : memref<8x32xf32, #tpu.memory_space<vmem>>, vector<8x32xf32>
    %cst = arith.constant dense<0.000000e+00> : vector<16x32xf32>
    %2 = tpu.matmul %0, %1, %cst {dimension_numbers = #tpu.dot_dimension_numbers<[1], [0], [0], [1], [0, 0, 1, 1], [], []>} : vector<16x8xf32>, vector<8x32xf32>, vector<16x32xf32> -> vector<16x32xf32>
    %c0_3 = arith.constant 0 : index
    %c0_4 = arith.constant 0 : index
    %3 = vector.load %arg3[%c0_3, %c0_4] : memref<1x32xf32, #tpu.memory_space<vmem>>, vector<1x32xf32>
    %4 = vector.broadcast %3 : vector<1x32xf32> to vector<16x32xf32>
    %5 = arith.addf %2, %4 : vector<16x32xf32>
    %c0_5 = arith.constant 0 : index
    %c0_6 = arith.constant 0 : index
    %6 = vector.load %arg4[%c0_5, %c0_6] : memref<16x32xf32, #tpu.memory_space<vmem>>, vector<16x32xf32>
    tpu.vector_store %arg4[%c0_5, %c0_6], %5 {strides = array<i32>} : memref<16x32xf32, #tpu.memory_space<vmem>>, vector<16x32xf32>,
    return
  }
  func.func @transform_0(%arg0: i32) -> (i32, i32) {
    %c0_i32 = arith.constant 0 : i32
    %c0_i32_0 = arith.constant 0 : i32
    return %arg0, %c0_i32 : i32, i32
  }
  func.func @transform_1(%arg0: i32) -> (i32, i32) {
    %c0_i32 = arith.constant 0 : i32
    %c0_i32_0 = arith.constant 0 : i32
    %c0_i32_1 = arith.constant 0 : i32
    return %c0_i32, %c0_i32_0 : i32, i32
  }
  func.func @transform_2(%arg0: i32) -> (i32, i32) {
    %c0_i32 = arith.constant 0 : i32
    %c0_i32_0 = arith.constant 0 : i32
    %c0_i32_1 = arith.constant 0 : i32
    return %c0_i32, %c0_i32_0 : i32, i32
  }
  func.func @transform_3(%arg0: i32) -> (i32, i32) {
    %c0_i32 = arith.constant 0 : i32
    %c0_i32_0 = arith.constant 0 : i32
    return %arg0, %c0_i32 : i32, i32
  }
}

module attributes {stable_mosaic.version = 11 : i64} {
  func.func @_linear_kernel(%arg0: i32, %arg1: memref<8x16xf32, #tpu.memory_space<vmem>>, %arg2: memref<16x32xf32, #tpu.memory_space<vmem>>, %arg3: memref<1x32xf32, #tpu.memory_space<vmem>>, %arg4: memref<8x32xf32, #tpu.memory_space<vmem>>) attributes {dimension_semantics = [#tpu.dimension_semantics<parallel>], iteration_bounds = array<i64: 1>, scalar_prefetch = 0 : i64, scratch_operands = 0 : i64, tpu.core_type = #tpu.core_type<tc>, window_params = [{transform_indices = @transform_0, window_bounds = array<i64: 8, 16>}, {pipeline_mode = #tpu.pipeline_mode<synchronous>, transform_indices = @transform_1, window_bounds = array<i64: 16, 32>}, {pipeline_mode = #tpu.pipeline_mode<synchronous>, transform_indices = @transform_2, window_bounds = array<i64: 1, 32>}, {transform_indices = @transform_3, window_bounds = array<i64: 8, 32>}]} {
    %c0 = arith.constant 0 : index
    %c0_0 = arith.constant 0 : index
    %0 = vector.load %arg1[%c0, %c0_0] : memref<8x16xf32, #tpu.memory_space<vmem>>, vector<8x16xf32>
    %c0_1 = arith.constant 0 : index
    %c0_2 = arith.constant 0 : index
    %1 = vector.load %arg2[%c0_1, %c0_2] : memref<16x32xf32, #tpu.memory_space<vmem>>, vector<16x32xf32>
    %cst = arith.constant dense<0.000000e+00> : vector<8x32xf32>
    %2 = tpu.matmul %0, %1, %cst {dimension_numbers = #tpu.dot_dimension_numbers<[1], [0], [0], [1], [0, 0, 1, 1], [], []>} : vector<8x16xf32>, vector<16x32xf32>, vector<8x32xf32> -> vector<8x32xf32>
    %c0_3 = arith.constant 0 : index
    %c0_4 = arith.constant 0 : index
    %3 = vector.load %arg3[%c0_3, %c0_4] : memref<1x32xf32, #tpu.memory_space<vmem>>, vector<1x32xf32>
    %4 = vector.broadcast %3 : vector<1x32xf32> to vector<8x32xf32>
    %5 = arith.addf %2, %4 : vector<8x32xf32>
    %c0_5 = arith.constant 0 : index
    %c0_6 = arith.constant 0 : index
    %6 = vector.load %arg4[%c0_5, %c0_6] : memref<8x32xf32, #tpu.memory_space<vmem>>, vector<8x32xf32>
    tpu.vector_store %arg4[%c0_5, %c0_6], %5 {strides = array<i32>} : memref<8x32xf32, #tpu.memory_space<vmem>>, vector<8x32xf32>,
    return
  }
  func.func @transform_0(%arg0: i32) -> (i32, i32) {
    %c0_i32 = arith.constant 0 : i32
    %c0_i32_0 = arith.constant 0 : i32
    return %arg0, %c0_i32 : i32, i32
  }
  func.func @transform_1(%arg0: i32) -> (i32, i32) {
    %c0_i32 = arith.constant 0 : i32
    %c0_i32_0 = arith.constant 0 : i32
    %c0_i32_1 = arith.constant 0 : i32
    return %c0_i32, %c0_i32_0 : i32, i32
  }
  func.func @transform_2(%arg0: i32) -> (i32, i32) {
    %c0_i32 = arith.constant 0 : i32
    %c0_i32_0 = arith.constant 0 : i32
    %c0_i32_1 = arith.constant 0 : i32
    return %c0_i32, %c0_i32_0 : i32, i32
  }
  func.func @transform_3(%arg0: i32) -> (i32, i32) {
    %c0_i32 = arith.constant 0 : i32
    %c0_i32_0 = arith.constant 0 : i32
    return %arg0, %c0_i32 : i32, i32
  }
}

module attributes {stable_mosaic.version = 11 : i64} {
  func.func @_linear_kernel(%arg0: i32, %arg1: memref<2x16xf32, #tpu.memory_space<vmem>>, %arg2: memref<16x32xf32, #tpu.memory_space<vmem>>, %arg3: memref<1x32xf32, #tpu.memory_space<vmem>>, %arg4: memref<2x32xf32, #tpu.memory_space<vmem>>) attributes {dimension_semantics = [#tpu.dimension_semantics<parallel>], iteration_bounds = array<i64: 1>, scalar_prefetch = 0 : i64, scratch_operands = 0 : i64, tpu.core_type = #tpu.core_type<tc>, window_params = [{transform_indices = @transform_0, window_bounds = array<i64: 2, 16>}, {pipeline_mode = #tpu.pipeline_mode<synchronous>, transform_indices = @transform_1, window_bounds = array<i64: 16, 32>}, {pipeline_mode = #tpu.pipeline_mode<synchronous>, transform_indices = @transform_2, window_bounds = array<i64: 1, 32>}, {transform_indices = @transform_3, window_bounds = array<i64: 2, 32>}]} {
    %c0 = arith.constant 0 : index
    %c0_0 = arith.constant 0 : index
    %0 = vector.load %arg1[%c0, %c0_0] : memref<2x16xf32, #tpu.memory_space<vmem>>, vector<2x16xf32>
    %c0_1 = arith.constant 0 : index
    %c0_2 = arith.constant 0 : index
    %1 = vector.load %arg2[%c0_1, %c0_2] : memref<16x32xf32, #tpu.memory_space<vmem>>, vector<16x32xf32>
    %cst = arith.constant dense<0.000000e+00> : vector<2x32xf32>
    %2 = tpu.matmul %0, %1, %cst {dimension_numbers = #tpu.dot_dimension_numbers<[1], [0], [0], [1], [0, 0, 1, 1], [], []>} : vector<2x16xf32>, vector<16x32xf32>, vector<2x32xf32> -> vector<2x32xf32>
    %c0_3 = arith.constant 0 : index
    %c0_4 = arith.constant 0 : index
    %3 = vector.load %arg3[%c0_3, %c0_4] : memref<1x32xf32, #tpu.memory_space<vmem>>, vector<1x32xf32>
    %4 = vector.broadcast %3 : vector<1x32xf32> to vector<2x32xf32>
    %5 = arith.addf %2, %4 : vector<2x32xf32>
    %c0_5 = arith.constant 0 : index
    %c0_6 = arith.constant 0 : index
    %6 = vector.load %arg4[%c0_5, %c0_6] : memref<2x32xf32, #tpu.memory_space<vmem>>, vector<2x32xf32>
    tpu.vector_store %arg4[%c0_5, %c0_6], %5 {strides = array<i32>} : memref<2x32xf32, #tpu.memory_space<vmem>>, vector<2x32xf32>,
    return
  }
  func.func @transform_0(%arg0: i32) -> (i32, i32) {
    %c0_i32 = arith.constant 0 : i32
    %c0_i32_0 = arith.constant 0 : i32
    return %arg0, %c0_i32 : i32, i32
  }
  func.func @transform_1(%arg0: i32) -> (i32, i32) {
    %c0_i32 = arith.constant 0 : i32
    %c0_i32_0 = arith.constant 0 : i32
    %c0_i32_1 = arith.constant 0 : i32
    return %c0_i32, %c0_i32_0 : i32, i32
  }
  func.func @transform_2(%arg0: i32) -> (i32, i32) {
    %c0_i32 = arith.constant 0 : i32
    %c0_i32_0 = arith.constant 0 : i32
    %c0_i32_1 = arith.constant 0 : i32
    return %c0_i32, %c0_i32_0 : i32, i32
  }
  func.func @transform_3(%arg0: i32) -> (i32, i32) {
    %c0_i32 = arith.constant 0 : i32
    %c0_i32_0 = arith.constant 0 : i32
    return %arg0, %c0_i32 : i32, i32
  }
}

</mosaic_0001>

<llo_original>
// kernel: task_encoder_forward.3
$region0: #{task_encoder_forward.3}
  #allocation0 [shape = 'u32[]', space=smem, size = 0x4, offset = 0x4, fixed_abs, tag = 'smem constant byte address 0x4 - core index']
  #allocation1 [shape = 'u32[72,128]{1,0:T(1,128)}', space=vmem, size = 0x9000, scoped, tag = 'internal scratch']
  %s0 = inlined_call_operand.hbm [shape: f32[8,16], index: 0, kind: input, shape index: {}]
  %s1 = inlined_call_operand.vmem [shape: f32[16,32], index: 1, kind: input, shape index: {}]
  %s2 = inlined_call_operand.vmem [shape: f32[1,32], index: 2, kind: input, shape index: {}]
  %s3 = inlined_call_operand.hbm [shape: f32[8,32], index: 3, kind: output, shape index: {}]
  %s4 = sld [smem:[#allocation0]]
  $region26: #{task_encoder_forward.3} parent=0
    _
  %s6 = ssub.s32 1, %s4
  %s7 = scalar_select 0, %s6, %s4
  $region1: #{task_encoder_forward.3} parent=0
    #allocation2 [shape = 'u8[4096]{0}', space=vmem, size = 0x1000, scoped, tag = 'input window, operand 0, single buffered']
    #allocation3 [shape = 's32[1]{0}', space=sflag, size = 0x4, scoped, tag = 'scoped memory for task_encoder_forward.3']
    #allocation4 [shape = 's32[1]{0}', space=sflag, size = 0x4, scoped, tag = 'scoped memory for task_encoder_forward.3']
    #allocation5 [shape = 'u8[4096]{0}', space=vmem, size = 0x1000, scoped, tag = 'output window, operand 0, single buffered']
    %8 = vsyncpa [#allocation3], 0
    %9 = vsyncpa [#allocation4], 0
    // Predicated region
    $region2: #{task_encoder_forward.3} parent=1 // pred_check
      _
    $region3: #{task_encoder_forward.3} parent=1 // pred_check_branch
      %11 = sbr.rel (0) target = $region5
    $region4: #{task_encoder_forward.3} parent=1 // pred_region
      %13 = vsyncadd [#allocation3], 0
      %s15 = sshll.u32 %s0, 4
      %s16 = int_to_ptr.hbm [resolvable:$true] %s15
      %s17 = sshll.u32 [#allocation2], 4
      %s18 = int_to_ptr.vmem [resolvable:$true] %s17
      %20 = dma.hbm_to_vmem [thread:$0]  %s16, 128, %s18, [#allocation3]
    $region5: #{task_encoder_forward.3} parent=1 // pred_fallthru
      _
    // Predicated region
    $region6: #{task_encoder_forward.3} parent=1 // pred_check
      _
    $region7: #{task_encoder_forward.3} parent=1 // pred_check_branch
      %22 = sbr.rel (0) target = $region9
    $region8: #{task_encoder_forward.3} parent=1 // pred_region
      _
    $region9: #{task_encoder_forward.3} parent=1 // pred_fallthru
      _
    // Predicated region
    $region10: #{task_encoder_forward.3} parent=1 // pred_check
      _
    $region11: #{task_encoder_forward.3} parent=1 // pred_check_branch
      %24 = sbr.rel (0) target = $region13
    $region12: #{task_encoder_forward.3} parent=1 // pred_region
      _
    $region13: #{task_encoder_forward.3} parent=1 // pred_fallthru
      _
    // Predicated region
    $region14: #{task_encoder_forward.3} parent=1 // pred_check
      _
    $region15: #{task_encoder_forward.3} parent=1 // pred_check_branch
      %26 = sbr.rel (0) target = $region17
    $region16: #{task_encoder_forward.3} parent=1 // pred_region
      %28 = dma.done [#allocation3], 128
    $region17: #{task_encoder_forward.3} parent=1 // pred_fallthru
      _
    %v29 = vld [vmem:[#allocation2] sm:$0xff]
    %v30 = vld [vmem:[%s1] sm:$0xff]
    %v31 = vld [vmem:[%s1 + $0x8] sm:$0xff]
    %v32 = vld [vmem:[%s2] sm:$0x1]
    %v34 = vperm.slane %v32, 0
    %vm36 = vcmask 130048
    %v38 = vsel %vm36, %v29, 0
    %40 = vmatpush.msra.mxu0 0.0
    %41 = vmatpush.msra.mxu0 0.0
    %42 = vmatpush.msra.mxu0 0.0
    %43 = vmatpush.msra.mxu0 0.0
    %44 = vmatpush.msra.mxu0 0.0
    %45 = vmatpush.msra.mxu0 0.0
    %46 = vmatpush.msra.mxu0 0.0
    %47 = vmatpush.msra.mxu0 0.0
    %48 = vmatpush.msra.mxu0 0.0
    %49 = vmatpush.msra.mxu0 0.0
    %50 = vmatpush.msra.mxu0 0.0
    %51 = vmatpush.msra.mxu0 0.0
    %52 = vmatpush.msra.mxu0 0.0
    %53 = vmatpush.msra.mxu0 0.0
    %54 = vmatpush.msra.mxu0 %v31
    %55 = vmatpush.msra.mxu0 %v30
    %56 = vmatmul.f32.gmra.mxu0 %v38
    %v57 = vpop.f32.mrf.mxu0
    %v58 = vadd.f32 %v34, %v57
    %59 = vdwg.mxu0
    %vm60 = vcmask 261120
    %61 = vst.msk [vmem:[#allocation5] sm:$0xff] %vm60, %v58
    // Predicated region
    $region18: #{task_encoder_forward.3} parent=1 // pred_check
      _
    $region19: #{task_encoder_forward.3} parent=1 // pred_check_branch
      %63 = sbr.rel (0) target = $region21
    $region20: #{task_encoder_forward.3} parent=1 // pred_region
      %65 = vsyncadd [#allocation4], 0
      %s67 = sshll.u32 [#allocation5], 4
      %s68 = int_to_ptr.vmem [resolvable:$true] %s67
      %s69 = sshll.u32 %s3, 4
      %s70 = int_to_ptr.hbm [resolvable:$true] %s69
      %72 = dma.vmem_to_hbm [thread:$0]  %s68, 128, %s70, [#allocation4]
    $region21: #{task_encoder_forward.3} parent=1 // pred_fallthru
      _
    // Predicated region
    $region22: #{task_encoder_forward.3} parent=1 // pred_check
      _
    $region23: #{task_encoder_forward.3} parent=1 // pred_check_branch
      %74 = sbr.rel (0) target = $region25
    $region24: #{task_encoder_forward.3} parent=1 // pred_region
      %76 = dma.done [#allocation4], 128
    $region25: #{task_encoder_forward.3} parent=1 // pred_fallthru
      _
    %77 = vsyncpa [#allocation3], 1
    %78 = vsyncpa [#allocation4], 1

// kernel: task_encoder_forward.4
$region0: #{task_encoder_forward.4}
  #allocation0 [shape = 'u32[]', space=smem, size = 0x4, offset = 0x4, fixed_abs, tag = 'smem constant byte address 0x4 - core index']
  #allocation1 [shape = 'u32[72,128]{1,0:T(1,128)}', space=vmem, size = 0x9000, scoped, tag = 'internal scratch']
  %s0 = inlined_call_operand.vmem [shape: f32[16,8], index: 0, kind: input, shape index: {}]
  %s1 = inlined_call_operand.vmem [shape: f32[8,32], index: 1, kind: input, shape index: {}]
  %s2 = inlined_call_operand.vmem [shape: f32[1,32], index: 2, kind: input, shape index: {}]
  %s3 = inlined_call_operand.hbm [shape: f32[16,32], index: 3, kind: output, shape index: {}]
  %s4 = sld [smem:[#allocation0]]
  $region22: #{task_encoder_forward.4} parent=0
    _
  %s6 = ssub.s32 1, %s4
  %s7 = scalar_select 0, %s6, %s4
  $region1: #{task_encoder_forward.4} parent=0
    #allocation2 [shape = 'u8[8192]{0}', space=vmem, size = 0x2000, scoped, tag = 'output window, operand 0, single buffered']
    #allocation3 [shape = 's32[1]{0}', space=sflag, size = 0x4, scoped, tag = 'scoped memory for task_encoder_forward.4']
    %8 = vsyncpa [#allocation3], 0
    // Predicated region
    $region2: #{task_encoder_forward.4} parent=1 // pred_check
      _
    $region3: #{task_encoder_forward.4} parent=1 // pred_check_branch
      %10 = sbr.rel (0) target = $region5
    $region4: #{task_encoder_forward.4} parent=1 // pred_region
      _
    $region5: #{task_encoder_forward.4} parent=1 // pred_fallthru
      _
    // Predicated region
    $region6: #{task_encoder_forward.4} parent=1 // pred_check
      _
    $region7: #{task_encoder_forward.4} parent=1 // pred_check_branch
      %12 = sbr.rel (0) target = $region9
    $region8: #{task_encoder_forward.4} parent=1 // pred_region
      _
    $region9: #{task_encoder_forward.4} parent=1 // pred_fallthru
      _
    // Predicated region
    $region10: #{task_encoder_forward.4} parent=1 // pred_check
      _
    $region11: #{task_encoder_forward.4} parent=1 // pred_check_branch
      %14 = sbr.rel (0) target = $region13
    $region12: #{task_encoder_forward.4} parent=1 // pred_region
      _
    $region13: #{task_encoder_forward.4} parent=1 // pred_fallthru
      _
    %v15 = vld [vmem:[%s0] sm:$0xff]
    %v16 = vld [vmem:[%s0 + $0x8] sm:$0xff]
    %v17 = vld [vmem:[%s1] sm:$0xff]
    %v18 = vld [vmem:[%s2] sm:$0x1]
    %v20 = vperm.slane %v18, 0
    %vm22 = vcmask 64512
    %v24 = vsel %vm22, %v15, 0
    %v27 = vsel %vm22, %v16, 0
    %29 = vmatpush.msra.mxu0 0.0
    %30 = vmatpush.msra.mxu0 0.0
    %31 = vmatpush.msra.mxu0 0.0
    %32 = vmatpush.msra.mxu0 0.0
    %33 = vmatpush.msra.mxu0 0.0
    %34 = vmatpush.msra.mxu0 0.0
    %35 = vmatpush.msra.mxu0 0.0
    %36 = vmatpush.msra.mxu0 0.0
    %37 = vmatpush.msra.mxu0 0.0
    %38 = vmatpush.msra.mxu0 0.0
    %39 = vmatpush.msra.mxu0 0.0
    %40 = vmatpush.msra.mxu0 0.0
    %41 = vmatpush.msra.mxu0 0.0
    %42 = vmatpush.msra.mxu0 0.0
    %43 = vmatpush.msra.mxu0 0.0
    %44 = vmatpush.msra.mxu0 %v17
    %45 = vmatmul.f32.gmra.mxu0 %v24
    %v46 = vpop.f32.mrf.mxu0
    %v47 = vadd.f32 %v20, %v46
    %48 = vmatmul.f32.gmra.mxu0 %v27
    %v49 = vpop.f32.mrf.mxu0
    %v50 = vadd.f32 %v20, %v49
    %51 = vdwg.mxu0
    %vm52 = vcmask 261120
    %53 = vst.msk [vmem:[#allocation2] sm:$0xff] %vm52, %v47
    %54 = vst.msk [vmem:[#allocation2 + $0x8] sm:$0xff] %vm52, %v50
    // Predicated region
    $region14: #{task_encoder_forward.4} parent=1 // pred_check
      _
    $region15: #{task_encoder_forward.4} parent=1 // pred_check_branch
      %56 = sbr.rel (0) target = $region17
    $region16: #{task_encoder_forward.4} parent=1 // pred_region
      %58 = vsyncadd [#allocation3], 0
      %s59 = sshll.u32 [#allocation2], 4
      %s60 = int_to_ptr.vmem [resolvable:$true] %s59
      %s61 = sshll.u32 %s3, 4
      %s62 = int_to_ptr.hbm [resolvable:$true] %s61
      %67 = dma.vmem_to_hbm [thread:$0]  %s60, 256, %s62, [#allocation3], 128, 128, 8
    $region17: #{task_encoder_forward.4} parent=1 // pred_fallthru
      _
    // Predicated region
    $region18: #{task_encoder_forward.4} parent=1 // pred_check
      _
    $region19: #{task_encoder_forward.4} parent=1 // pred_check_branch
      %69 = sbr.rel (0) target = $region21
    $region20: #{task_encoder_forward.4} parent=1 // pred_region
      %71 = dma.done [#allocation3], 256
    $region21: #{task_encoder_forward.4} parent=1 // pred_fallthru
      _
    %72 = vsyncpa [#allocation3], 1

// kernel: task_encoder_forward.5
$region0: #{task_encoder_forward.5}
  #allocation0 [shape = 'u32[]', space=smem, size = 0x4, offset = 0x4, fixed_abs, tag = 'smem constant byte address 0x4 - core index']
  #allocation1 [shape = 'u32[72,128]{1,0:T(1,128)}', space=vmem, size = 0x9000, scoped, tag = 'internal scratch']
  %s0 = inlined_call_operand.vmem [shape: f32[2,16], index: 0, kind: input, shape index: {}]
  %s1 = inlined_call_operand.vmem [shape: f32[16,32], index: 1, kind: input, shape index: {}]
  %s2 = inlined_call_operand.vmem [shape: f32[1,32], index: 2, kind: input, shape index: {}]
  %s3 = inlined_call_operand.hbm [shape: f32[2,32], index: 3, kind: output, shape index: {}]
  %s4 = sld [smem:[#allocation0]]
  $region22: #{task_encoder_forward.5} parent=0
    _
  %s6 = ssub.s32 1, %s4
  %s7 = scalar_select 0, %s6, %s4
  $region1: #{task_encoder_forward.5} parent=0
    #allocation2 [shape = 'u8[1024]{0}', space=vmem, size = 0x400, scoped, tag = 'output window, operand 0, single buffered']
    #allocation3 [shape = 's32[1]{0}', space=sflag, size = 0x4, scoped, tag = 'scoped memory for task_encoder_forward.5']
    %8 = vsyncpa [#allocation3], 0
    // Predicated region
    $region2: #{task_encoder_forward.5} parent=1 // pred_check
      _
    $region3: #{task_encoder_forward.5} parent=1 // pred_check_branch
      %10 = sbr.rel (0) target = $region5
    $region4: #{task_encoder_forward.5} parent=1 // pred_region
      _
    $region5: #{task_encoder_forward.5} parent=1 // pred_fallthru
      _
    // Predicated region
    $region6: #{task_encoder_forward.5} parent=1 // pred_check
      _
    $region7: #{task_encoder_forward.5} parent=1 // pred_check_branch
      %12 = sbr.rel (0) target = $region9
    $region8: #{task_encoder_forward.5} parent=1 // pred_region
      _
    $region9: #{task_encoder_forward.5} parent=1 // pred_fallthru
      _
    // Predicated region
    $region10: #{task_encoder_forward.5} parent=1 // pred_check
      _
    $region11: #{task_encoder_forward.5} parent=1 // pred_check_branch
      %14 = sbr.rel (0) target = $region13
    $region12: #{task_encoder_forward.5} parent=1 // pred_region
      _
    $region13: #{task_encoder_forward.5} parent=1 // pred_fallthru
      _
    %v15 = vld [vmem:[%s0] sm:$0x3]
    %v16 = vld [vmem:[%s1] sm:$0xff]
    %v17 = vld [vmem:[%s1 + $0x8] sm:$0xff]
    %v18 = vld [vmem:[%s2] sm:$0x1]
    %v20 = vperm.slane %v18, 0
    %vm22 = vcmask 130048
    %v24 = vsel %vm22, %v15, 0
    %26 = vmatpush.msra.mxu0 0.0
    %27 = vmatpush.msra.mxu0 0.0
    %28 = vmatpush.msra.mxu0 0.0
    %29 = vmatpush.msra.mxu0 0.0
    %30 = vmatpush.msra.mxu0 0.0
    %31 = vmatpush.msra.mxu0 0.0
    %32 = vmatpush.msra.mxu0 0.0
    %33 = vmatpush.msra.mxu0 0.0
    %34 = vmatpush.msra.mxu0 0.0
    %35 = vmatpush.msra.mxu0 0.0
    %36 = vmatpush.msra.mxu0 0.0
    %37 = vmatpush.msra.mxu0 0.0
    %38 = vmatpush.msra.mxu0 0.0
    %39 = vmatpush.msra.mxu0 0.0
    %40 = vmatpush.msra.mxu0 %v17
    %41 = vmatpush.msra.mxu0 %v16
    %42 = vmatmul.f32.gmra.mxu0 %v24
    %v43 = vpop.f32.mrf.mxu0
    %v44 = vadd.f32 %v20, %v43
    %45 = vdwg.mxu0
    %vm46 = vcmask 254976
    %47 = vst.msk [vmem:[#allocation2] sm:$0x3] %vm46, %v44
    // Predicated region
    $region14: #{task_encoder_forward.5} parent=1 // pred_check
      _
    $region15: #{task_encoder_forward.5} parent=1 // pred_check_branch
      %49 = sbr.rel (0) target = $region17
    $region16: #{task_encoder_forward.5} parent=1 // pred_region
      %51 = vsyncadd [#allocation3], 0
      %s53 = sshll.u32 [#allocation2], 4
      %s54 = int_to_ptr.vmem [resolvable:$true] %s53
      %s55 = sshll.u32 %s3, 4
      %s56 = int_to_ptr.hbm [resolvable:$true] %s55
      %58 = dma.vmem_to_hbm [thread:$0]  %s54, 32, %s56, [#allocation3]
    $region17: #{task_encoder_forward.5} parent=1 // pred_fallthru
      _
    // Predicated region
    $region18: #{task_encoder_forward.5} parent=1 // pred_check
      _
    $region19: #{task_encoder_forward.5} parent=1 // pred_check_branch
      %60 = sbr.rel (0) target = $region21
    $region20: #{task_encoder_forward.5} parent=1 // pred_region
      %62 = dma.done [#allocation3], 32
    $region21: #{task_encoder_forward.5} parent=1 // pred_fallthru
      _
    %63 = vsyncpa [#allocation3], 1

</llo_original>
